<compile_context>
chip_gen: v7x
topology: tpu7x:2x2x1
jax: 0.10.0
libtpu: 0.0.40
codegen_flags: <defaults>
</compile_context>

<pallas_src>
import jax
import jax.numpy as jnp
from jax.experimental import pallas as pl
from jax.experimental.pallas import tpu as pltpu

AUD = 192          # aud_size
IMG = 512          # img_size
HID = 192          # merged_stack hidden width
OUT = 2            # merged_stack output width
OUT_PAD = 128      # lane-dense padded output width


def _round_up(x, m):
    return (x + m - 1) // m * m


# ---------------------------------------------------------------------------
# Kernel
# ---------------------------------------------------------------------------
def vff_kernel(x_aud_ref, x_img_ref,
               w_img_ref, b_img_ref,
               w_aud_ref, b_aud_ref,
               w1_ref, b1_ref,
               w2_ref, b2_ref,
               o_ref):
    tb = x_aud_ref.shape[0]
    f32 = jnp.float32
    bf16 = jnp.bfloat16

    # --- branch layers -------------------------------------------------------
    # Shared img_layer on both image halves fused into one MXU matmul:
    # stack left/right along M -> [2*tb, 512] @ [512, 192].
    x_lr = jnp.concatenate((x_img_ref[0], x_img_ref[1]), axis=0)       # [2*tb, 512] bf16
    h_lr = jnp.dot(x_lr, w_img_ref[...], preferred_element_type=f32) + b_img_ref[...]
    h_a = (jnp.dot(x_aud_ref[...], w_aud_ref[...], preferred_element_type=f32)
           + b_aud_ref[...])

    # --- merged_stack[0]: Linear(576 -> 192) ---------------------------------
    # concat([h_a, h_l, h_r], 1) @ W1 == h_a@W1[0:192] + h_l@W1[192:384] + h_r@W1[384:576]
    h_a16 = h_a.astype(bf16)
    h_lr16 = h_lr.astype(bf16)
    h = (jnp.dot(h_a16, w1_ref[0:AUD, :], preferred_element_type=f32)
         + jnp.dot(h_lr16[:tb, :], w1_ref[AUD:2 * AUD, :], preferred_element_type=f32)
         + jnp.dot(h_lr16[tb:, :], w1_ref[2 * AUD:3 * AUD, :], preferred_element_type=f32)
         + b1_ref[...])

    # --- ReLU + merged_stack[2]: Linear(192 -> 2), padded to 128 lanes -------
    h = jnp.maximum(h, 0.0).astype(bf16)
    o_ref[...] = (jnp.dot(h, w2_ref[...], preferred_element_type=f32)
                  + b2_ref[...]).astype(o_ref.dtype)


# ---------------------------------------------------------------------------
# Wrapper
# ---------------------------------------------------------------------------
def pack_params(p):
    """Kernel-ready params: bf16 weights, f32 biases, final layer padded to 128 lanes."""
    bf16 = jnp.bfloat16
    w2_pad = jnp.zeros((HID, OUT_PAD), jnp.float32).at[:, :OUT].set(p["w2_t"])
    b2_pad = jnp.zeros((1, OUT_PAD), jnp.float32).at[:, :OUT].set(p["b2"])
    return dict(
        w_img=p["w_img_t"].astype(bf16), b_img=p["b_img"].astype(jnp.float32),
        w_aud=p["w_aud_t"].astype(bf16), b_aud=p["b_aud"].astype(jnp.float32),
        w1=p["w1_t"].astype(bf16), b1=p["b1"].astype(jnp.float32),
        w2=w2_pad.astype(bf16), b2=b2_pad)


def vffnet_forward(x, pk, *, tile_b=512):
    """x: [B, 1216] float32, features = [aud(192) | img_left(512) | img_right(512)]."""
    B = x.shape[0]
    tb = _round_up(min(tile_b, _round_up(B, 8)), 8)
    b_pad = _round_up(B, tb)

    # Lane-aligned, bf16 inputs; image halves stacked on a leading axis.
    x_aud = x[:, :AUD].astype(jnp.bfloat16)                             # [B, 192]
    x_img = jnp.stack((x[:, AUD:AUD + IMG],
                       x[:, AUD + IMG:AUD + 2 * IMG]), axis=0).astype(jnp.bfloat16)  # [2,B,512]
    if b_pad != B:
        x_aud = jnp.pad(x_aud, ((0, b_pad - B), (0, 0)))
        x_img = jnp.pad(x_img, ((0, 0), (0, b_pad - B), (0, 0)))

    const2 = lambda i: (0, 0)
    in_specs = [
        pl.BlockSpec((tb, AUD), lambda i: (i, 0)),          # x_aud tile
        pl.BlockSpec((2, tb, IMG), lambda i: (0, i, 0)),    # x_img tile
        pl.BlockSpec((IMG, AUD), const2),                   # w_img (resident)
        pl.BlockSpec((1, AUD), const2),                     # b_img
        pl.BlockSpec((AUD, AUD), const2),                   # w_aud
        pl.BlockSpec((1, AUD), const2),                     # b_aud
        pl.BlockSpec((3 * AUD, HID), const2),               # w1
        pl.BlockSpec((1, HID), const2),                     # b1
        pl.BlockSpec((HID, OUT_PAD), const2),               # w2 (padded)
        pl.BlockSpec((1, OUT_PAD), const2),                 # b2 (padded)
    ]
    out_specs = pl.BlockSpec((tb, OUT_PAD), lambda i: (i, 0))

    args = (x_aud, x_img, pk["w_img"], pk["b_img"], pk["w_aud"], pk["b_aud"],
            pk["w1"], pk["b1"], pk["w2"], pk["b2"])

    flops = 2 * b_pad * (2 * IMG * AUD + AUD * AUD + 3 * AUD * HID + HID * OUT_PAD)
    w_bytes = sum(int(a.size) * a.dtype.itemsize for a in args[2:])
    bytes_accessed = (int(x_aud.size) * 2 + int(x_img.size) * 2
                      + b_pad * OUT_PAD * 4 + w_bytes)

    out = pl.pallas_call(
        vff_kernel,
        out_shape=jax.ShapeDtypeStruct((b_pad, OUT_PAD), jnp.float32),
        grid=(b_pad // tb,),
        in_specs=in_specs,
        out_specs=out_specs,
        compiler_params=pltpu.CompilerParams(
            dimension_semantics=("parallel",),
            vmem_limit_bytes=48 * 1024 * 1024),
        cost_estimate=pl.CostEstimate(flops=flops,
                                      transcendentals=0,
                                      bytes_accessed=bytes_accessed),
    )(*args)
    return out[:B, :OUT]


# ---------------------------------------------------------------------------
# Params + reference
# ---------------------------------------------------------------------------
def init_params(key):
    """PyTorch-Linear-style init: U(-1/sqrt(fan_in), +1/sqrt(fan_in)); weights stored [in, out]."""
    def linear(k, fan_in, fan_out):
        kw, kb = jax.random.split(k)
        bound = 1.0 / jnp.sqrt(jnp.float32(fan_in))
        w_t = jax.random.uniform(kw, (fan_in, fan_out), jnp.float32, -bound, bound)
        b = jax.random.uniform(kb, (1, fan_out), jnp.float32, -bound, bound)
        return w_t, b

    k_img, k_aud, k1, k2 = jax.random.split(key, 4)
    w_img_t, b_img = linear(k_img, IMG, AUD)      # img_layer: 512 -> 192
    w_aud_t, b_aud = linear(k_aud, AUD, AUD)      # aud_layer: 192 -> 192
    w1_t, b1 = linear(k1, AUD * 3, HID)           # merged[0]: 576 -> 192
    w2_t, b2 = linear(k2, HID, OUT)               # merged[2]: 192 -> 2
    return dict(w_img_t=w_img_t, b_img=b_img, w_aud_t=w_aud_t, b_aud=b_aud,
                w1_t=w1_t, b1=b1, w2_t=w2_t, b2=b2)


def vffnet_reference(x, pk):
    """Pure-JAX reference with the same bf16-weight / f32-accumulate numerics."""
    f32, bf16 = jnp.float32, jnp.bfloat16
    xa = x[:, :AUD].astype(bf16)
    xl = x[:, AUD:AUD + IMG].astype(bf16)
    xr = x[:, AUD + IMG:].astype(bf16)
    h_l = jnp.dot(xl, pk["w_img"], preferred_element_type=f32) + pk["b_img"]
    h_r = jnp.dot(xr, pk["w_img"], preferred_element_type=f32) + pk["b_img"]
    h_a = jnp.dot(xa, pk["w_aud"], preferred_element_type=f32) + pk["b_aud"]
    h = jnp.concatenate((h_a, h_l, h_r), axis=1).astype(bf16)
    h = jnp.dot(h, pk["w1"], preferred_element_type=f32) + pk["b1"]
    h = jnp.maximum(h, 0.0).astype(bf16)
    out = jnp.dot(h, pk["w2"], preferred_element_type=f32) + pk["b2"]
    return out[:, :OUT]


if __name__ == "__main__":
    key = jax.random.PRNGKey(0)
    k_params, k_x1, k_x2 = jax.random.split(key, 3)
    params = init_params(k_params)
    pk = pack_params(params)

    # Small single-tile case.
    B1 = 8
    x1 = jax.random.normal(k_x1, (B1, AUD + 2 * IMG), jnp.float32)      # [8, 1216]
    out1 = jax.block_until_ready(vffnet_forward(x1, pk))
    ref1 = vffnet_reference(x1, pk)
    assert out1.shape == (B1, OUT), out1.shape
    assert jnp.allclose(out1, ref1, atol=2e-3, rtol=2e-3), \
        float(jnp.max(jnp.abs(out1 - ref1)))

    # Multi-tile case exercising the batch grid (grid=(3,), tile_b=8).
    B2 = 24
    x2 = jax.random.normal(k_x2, (B2, AUD + 2 * IMG), jnp.float32)      # [24, 1216]
    out2 = jax.block_until_ready(vffnet_forward(x2, pk, tile_b=8))
    ref2 = vffnet_reference(x2, pk)
    assert out2.shape == (B2, OUT), out2.shape
    assert jnp.allclose(out2, ref2, atol=2e-3, rtol=2e-3), \
        float(jnp.max(jnp.abs(out2 - ref2)))

    print("KERNEL_OK")
</pallas_src>

<mosaic_0001>
module attributes {stable_mosaic.version = 11 : i64} {
  func.func @vff_kernel(%arg0: i32, %arg1: memref<8x192xbf16, #tpu.memory_space<vmem>>, %arg2: memref<2x8x512xbf16, #tpu.memory_space<vmem>>, %arg3: memref<512x192xbf16, #tpu.memory_space<vmem>>, %arg4: memref<1x192xf32, #tpu.memory_space<vmem>>, %arg5: memref<192x192xbf16, #tpu.memory_space<vmem>>, %arg6: memref<1x192xf32, #tpu.memory_space<vmem>>, %arg7: memref<576x192xbf16, #tpu.memory_space<vmem>>, %arg8: memref<1x192xf32, #tpu.memory_space<vmem>>, %arg9: memref<192x128xbf16, #tpu.memory_space<vmem>>, %arg10: memref<1x128xf32, #tpu.memory_space<vmem>>, %arg11: memref<8x128xf32, #tpu.memory_space<vmem>>) attributes {dimension_semantics = [#tpu.dimension_semantics<parallel>], iteration_bounds = array<i64: 1>, scalar_prefetch = 0 : i64, scratch_operands = 0 : i64, tpu.core_type = #tpu.core_type<tc>, window_params = [{transform_indices = @transform_0, window_bounds = array<i64: 8, 192>}, {transform_indices = @transform_1, window_bounds = array<i64: 2, 8, 512>}, {pipeline_mode = #tpu.pipeline_mode<synchronous>, transform_indices = @transform_2, window_bounds = array<i64: 512, 192>}, {pipeline_mode = #tpu.pipeline_mode<synchronous>, transform_indices = @transform_3, window_bounds = array<i64: 1, 192>}, {pipeline_mode = #tpu.pipeline_mode<synchronous>, transform_indices = @transform_4, window_bounds = array<i64: 192, 192>}, {pipeline_mode = #tpu.pipeline_mode<synchronous>, transform_indices = @transform_5, window_bounds = array<i64: 1, 192>}, {pipeline_mode = #tpu.pipeline_mode<synchronous>, transform_indices = @transform_6, window_bounds = array<i64: 576, 192>}, {pipeline_mode = #tpu.pipeline_mode<synchronous>, transform_indices = @transform_7, window_bounds = array<i64: 1, 192>}, {pipeline_mode = #tpu.pipeline_mode<synchronous>, transform_indices = @transform_8, window_bounds = array<i64: 192, 128>}, {pipeline_mode = #tpu.pipeline_mode<synchronous>, transform_indices = @transform_9, window_bounds = array<i64: 1, 128>}, {transform_indices = @transform_10, window_bounds = array<i64: 8, 128>}]} {
    %c0 = arith.constant 0 : index
    %c0_0 = arith.constant 0 : index
    %c0_1 = arith.constant 0 : index
    %0 = vector.load %arg2[%c0, %c0_0, %c0_1] : memref<2x8x512xbf16, #tpu.memory_space<vmem>>, vector<1x8x512xbf16>
    %1 = vector.shape_cast %0 : vector<1x8x512xbf16> to vector<8x512xbf16>
    %c1 = arith.constant 1 : index
    %c0_2 = arith.constant 0 : index
    %c0_3 = arith.constant 0 : index
    %2 = vector.load %arg2[%c1, %c0_2, %c0_3] : memref<2x8x512xbf16, #tpu.memory_space<vmem>>, vector<1x8x512xbf16>
    %3 = vector.shape_cast %2 : vector<1x8x512xbf16> to vector<8x512xbf16>
    %4 = tpu.concatenate %1, %3 in 0 : vector<8x512xbf16>, vector<8x512xbf16> -> vector<16x512xbf16>
    %c0_4 = arith.constant 0 : index
    %c0_5 = arith.constant 0 : index
    %5 = vector.load %arg3[%c0_4, %c0_5] : memref<512x192xbf16, #tpu.memory_space<vmem>>, vector<512x192xbf16>
    %cst = arith.constant dense<0.000000e+00> : vector<16x192xf32>
    %6 = tpu.matmul %4, %5, %cst {dimension_numbers = #tpu.dot_dimension_numbers<[1], [0], [0], [1], [0, 0, 1, 1], [], []>} : vector<16x512xbf16>, vector<512x192xbf16>, vector<16x192xf32> -> vector<16x192xf32>
    %c0_6 = arith.constant 0 : index
    %c0_7 = arith.constant 0 : index
    %7 = vector.load %arg4[%c0_6, %c0_7] : memref<1x192xf32, #tpu.memory_space<vmem>>, vector<1x192xf32>
    %8 = vector.broadcast %7 : vector<1x192xf32> to vector<16x192xf32>
    %9 = arith.addf %6, %8 : vector<16x192xf32>
    %c0_8 = arith.constant 0 : index
    %c0_9 = arith.constant 0 : index
    %10 = vector.load %arg1[%c0_8, %c0_9] : memref<8x192xbf16, #tpu.memory_space<vmem>>, vector<8x192xbf16>
    %c0_10 = arith.constant 0 : index
    %c0_11 = arith.constant 0 : index
    %11 = vector.load %arg5[%c0_10, %c0_11] : memref<192x192xbf16, #tpu.memory_space<vmem>>, vector<192x192xbf16>
    %cst_12 = arith.constant dense<0.000000e+00> : vector<8x192xf32>
    %12 = tpu.matmul %10, %11, %cst_12 {dimension_numbers = #tpu.dot_dimension_numbers<[1], [0], [0], [1], [0, 0, 1, 1], [], []>} : vector<8x192xbf16>, vector<192x192xbf16>, vector<8x192xf32> -> vector<8x192xf32>
    %c0_13 = arith.constant 0 : index
    %c0_14 = arith.constant 0 : index
    %13 = vector.load %arg6[%c0_13, %c0_14] : memref<1x192xf32, #tpu.memory_space<vmem>>, vector<1x192xf32>
    %14 = vector.broadcast %13 : vector<1x192xf32> to vector<8x192xf32>
    %15 = arith.addf %12, %14 : vector<8x192xf32>
    %16 = arith.truncf %15 : vector<8x192xf32> to vector<8x192xbf16>
    %17 = arith.truncf %9 : vector<16x192xf32> to vector<16x192xbf16>
    %c0_15 = arith.constant 0 : index
    %c0_16 = arith.constant 0 : index
    %18 = vector.load %arg7[%c0_15, %c0_16] : memref<576x192xbf16, #tpu.memory_space<vmem>>, vector<192x192xbf16>
    %cst_17 = arith.constant dense<0.000000e+00> : vector<8x192xf32>
    %19 = tpu.matmul %16, %18, %cst_17 {dimension_numbers = #tpu.dot_dimension_numbers<[1], [0], [0], [1], [0, 0, 1, 1], [], []>} : vector<8x192xbf16>, vector<192x192xbf16>, vector<8x192xf32> -> vector<8x192xf32>
    %20 = vector.extract_strided_slice %17 {offsets = [0, 0], sizes = [8, 192], strides = [1, 1]} : vector<16x192xbf16> to vector<8x192xbf16>
    %c192 = arith.constant 192 : index
    %c0_18 = arith.constant 0 : index
    %21 = vector.load %arg7[%c192, %c0_18] : memref<576x192xbf16, #tpu.memory_space<vmem>>, vector<192x192xbf16>
    %cst_19 = arith.constant dense<0.000000e+00> : vector<8x192xf32>
    %22 = tpu.matmul %20, %21, %cst_19 {dimension_numbers = #tpu.dot_dimension_numbers<[1], [0], [0], [1], [0, 0, 1, 1], [], []>} : vector<8x192xbf16>, vector<192x192xbf16>, vector<8x192xf32> -> vector<8x192xf32>
    %23 = arith.addf %19, %22 : vector<8x192xf32>
    %24 = vector.extract_strided_slice %17 {offsets = [8, 0], sizes = [8, 192], strides = [1, 1]} : vector<16x192xbf16> to vector<8x192xbf16>
    %c384 = arith.constant 384 : index
    %c0_20 = arith.constant 0 : index
    %25 = vector.load %arg7[%c384, %c0_20] : memref<576x192xbf16, #tpu.memory_space<vmem>>, vector<192x192xbf16>
    %cst_21 = arith.constant dense<0.000000e+00> : vector<8x192xf32>
    %26 = tpu.matmul %24, %25, %cst_21 {dimension_numbers = #tpu.dot_dimension_numbers<[1], [0], [0], [1], [0, 0, 1, 1], [], []>} : vector<8x192xbf16>, vector<192x192xbf16>, vector<8x192xf32> -> vector<8x192xf32>
    %27 = arith.addf %23, %26 : vector<8x192xf32>
    %c0_22 = arith.constant 0 : index
    %c0_23 = arith.constant 0 : index
    %28 = vector.load %arg8[%c0_22, %c0_23] : memref<1x192xf32, #tpu.memory_space<vmem>>, vector<1x192xf32>
    %29 = vector.broadcast %28 : vector<1x192xf32> to vector<8x192xf32>
    %30 = arith.addf %27, %29 : vector<8x192xf32>
    %cst_24 = arith.constant 0.000000e+00 : f32
    %31 = vector.broadcast %cst_24 : f32 to vector<8x192xf32>
    %32 = arith.maximumf %30, %31 : vector<8x192xf32>
    %33 = arith.truncf %32 : vector<8x192xf32> to vector<8x192xbf16>
    %c0_25 = arith.constant 0 : index
    %c0_26 = arith.constant 0 : index
    %34 = vector.load %arg9[%c0_25, %c0_26] : memref<192x128xbf16, #tpu.memory_space<vmem>>, vector<192x128xbf16>
    %cst_27 = arith.constant dense<0.000000e+00> : vector<8x128xf32>
    %35 = tpu.matmul %33, %34, %cst_27 {dimension_numbers = #tpu.dot_dimension_numbers<[1], [0], [0], [1], [0, 0, 1, 1], [], []>} : vector<8x192xbf16>, vector<192x128xbf16>, vector<8x128xf32> -> vector<8x128xf32>
    %c0_28 = arith.constant 0 : index
    %c0_29 = arith.constant 0 : index
    %36 = vector.load %arg10[%c0_28, %c0_29] : memref<1x128xf32, #tpu.memory_space<vmem>>, vector<1x128xf32>
    %37 = vector.broadcast %36 : vector<1x128xf32> to vector<8x128xf32>
    %38 = arith.addf %35, %37 : vector<8x128xf32>
    %c0_30 = arith.constant 0 : index
    %c0_31 = arith.constant 0 : index
    %39 = vector.load %arg11[%c0_30, %c0_31] : memref<8x128xf32, #tpu.memory_space<vmem>>, vector<8x128xf32>
    tpu.vector_store %arg11[%c0_30, %c0_31], %38 {strides = array<i32>} : memref<8x128xf32, #tpu.memory_space<vmem>>, vector<8x128xf32>,
    return
  }
  func.func @transform_0(%arg0: i32) -> (i32, i32) {
    %c0_i32 = arith.constant 0 : i32
    %c0_i32_0 = arith.constant 0 : i32
    return %arg0, %c0_i32 : i32, i32
  }
  func.func @transform_1(%arg0: i32) -> (i32, i32, i32) {
    %c0_i32 = arith.constant 0 : i32
    %c0_i32_0 = arith.constant 0 : i32
    %c0_i32_1 = arith.constant 0 : i32
    return %c0_i32, %arg0, %c0_i32_0 : i32, i32, i32
  }
  func.func @transform_2(%arg0: i32) -> (i32, i32) {
    %c0_i32 = arith.constant 0 : i32
    %c0_i32_0 = arith.constant 0 : i32
    %c0_i32_1 = arith.constant 0 : i32
    return %c0_i32, %c0_i32_0 : i32, i32
  }
  func.func @transform_3(%arg0: i32) -> (i32, i32) {
    %c0_i32 = arith.constant 0 : i32
    %c0_i32_0 = arith.constant 0 : i32
    %c0_i32_1 = arith.constant 0 : i32
    return %c0_i32, %c0_i32_0 : i32, i32
  }
  func.func @transform_4(%arg0: i32) -> (i32, i32) {
    %c0_i32 = arith.constant 0 : i32
    %c0_i32_0 = arith.constant 0 : i32
    %c0_i32_1 = arith.constant 0 : i32
    return %c0_i32, %c0_i32_0 : i32, i32
  }
  func.func @transform_5(%arg0: i32) -> (i32, i32) {
    %c0_i32 = arith.constant 0 : i32
    %c0_i32_0 = arith.constant 0 : i32
    %c0_i32_1 = arith.constant 0 : i32
    return %c0_i32, %c0_i32_0 : i32, i32
  }
  func.func @transform_6(%arg0: i32) -> (i32, i32) {
    %c0_i32 = arith.constant 0 : i32
    %c0_i32_0 = arith.constant 0 : i32
    %c0_i32_1 = arith.constant 0 : i32
    return %c0_i32, %c0_i32_0 : i32, i32
  }
  func.func @transform_7(%arg0: i32) -> (i32, i32) {
    %c0_i32 = arith.constant 0 : i32
    %c0_i32_0 = arith.constant 0 : i32
    %c0_i32_1 = arith.constant 0 : i32
    return %c0_i32, %c0_i32_0 : i32, i32
  }
  func.func @transform_8(%arg0: i32) -> (i32, i32) {
    %c0_i32 = arith.constant 0 : i32
    %c0_i32_0 = arith.constant 0 : i32
    %c0_i32_1 = arith.constant 0 : i32
    return %c0_i32, %c0_i32_0 : i32, i32
  }
  func.func @transform_9(%arg0: i32) -> (i32, i32) {
    %c0_i32 = arith.constant 0 : i32
    %c0_i32_0 = arith.constant 0 : i32
    %c0_i32_1 = arith.constant 0 : i32
    return %c0_i32, %c0_i32_0 : i32, i32
  }
  func.func @transform_10(%arg0: i32) -> (i32, i32) {
    %c0_i32 = arith.constant 0 : i32
    %c0_i32_0 = arith.constant 0 : i32
    return %arg0, %c0_i32 : i32, i32
  }
}

</mosaic_0001>

<llo_original>
// kernel: tpu_custom_call.1
$region0: #{tpu_custom_call.1}
  #allocation0 [shape = 'u32[]', space=smem, size = 0x4, offset = 0x4, fixed_abs, tag = 'smem constant byte address 0x4 - core index']
  #allocation1 [shape = 'u32[144,128]{1,0:T(1,128)}', space=vmem, size = 0x12000, scoped, tag = 'internal scratch']
  %s0 = inlined_call_operand.vmem [shape: bf16[8,192], index: 0, kind: input, shape index: {}]
  %s1 = inlined_call_operand.vmem [shape: bf16[2,8,512], index: 1, kind: input, shape index: {}]
  %s2 = inlined_call_operand.vmem [shape: bf16[512,192], index: 2, kind: input, shape index: {}]
  %s3 = inlined_call_operand.vmem [shape: f32[1,192], index: 3, kind: input, shape index: {}]
  %s4 = inlined_call_operand.vmem [shape: bf16[192,192], index: 4, kind: input, shape index: {}]
  %s5 = inlined_call_operand.vmem [shape: f32[1,192], index: 5, kind: input, shape index: {}]
  %s6 = inlined_call_operand.vmem [shape: bf16[576,192], index: 6, kind: input, shape index: {}]
  %s7 = inlined_call_operand.vmem [shape: f32[1,192], index: 7, kind: input, shape index: {}]
  %s8 = inlined_call_operand.vmem [shape: bf16[192,128], index: 8, kind: input, shape index: {}]
  %s9 = inlined_call_operand.vmem [shape: f32[1,128], index: 9, kind: input, shape index: {}]
  %s10 = inlined_call_operand.hbm [shape: f32[8,128], index: 10, kind: output, shape index: {}]
  %s11 = sld [smem:[#allocation0]]
  $region50: #{tpu_custom_call.1} parent=0
    _
  %s13 = ssub.s32 1, %s11
  %s14 = scalar_select 0, %s13, %s11
  $region1: #{tpu_custom_call.1} parent=0
    #allocation2 [shape = 'u8[4096]{0}', space=vmem, size = 0x1000, scoped, tag = 'output window, operand 0, single buffered']
    #allocation3 [shape = 's32[1]{0}', space=sflag, size = 0x4, scoped, tag = 'scoped memory for tpu_custom_call.1']
    %15 = vsyncpa [#allocation3], 0
    // Predicated region
    $region2: #{tpu_custom_call.1} parent=1 // pred_check
      _
    $region3: #{tpu_custom_call.1} parent=1 // pred_check_branch
      %17 = sbr.rel (0) target = $region5
    $region4: #{tpu_custom_call.1} parent=1 // pred_region
      _
    $region5: #{tpu_custom_call.1} parent=1 // pred_fallthru
      _
    // Predicated region
    $region6: #{tpu_custom_call.1} parent=1 // pred_check
      _
    $region7: #{tpu_custom_call.1} parent=1 // pred_check_branch
      %19 = sbr.rel (0) target = $region9
    $region8: #{tpu_custom_call.1} parent=1 // pred_region
      _
    $region9: #{tpu_custom_call.1} parent=1 // pred_fallthru
      _
    // Predicated region
    $region10: #{tpu_custom_call.1} parent=1 // pred_check
      _
    $region11: #{tpu_custom_call.1} parent=1 // pred_check_branch
      %21 = sbr.rel (0) target = $region13
    $region12: #{tpu_custom_call.1} parent=1 // pred_region
      _
    $region13: #{tpu_custom_call.1} parent=1 // pred_fallthru
      _
    // Predicated region
    $region14: #{tpu_custom_call.1} parent=1 // pred_check
      _
    $region15: #{tpu_custom_call.1} parent=1 // pred_check_branch
      %23 = sbr.rel (0) target = $region17
    $region16: #{tpu_custom_call.1} parent=1 // pred_region
      _
    $region17: #{tpu_custom_call.1} parent=1 // pred_fallthru
      _
    // Predicated region
    $region18: #{tpu_custom_call.1} parent=1 // pred_check
      _
    $region19: #{tpu_custom_call.1} parent=1 // pred_check_branch
      %25 = sbr.rel (0) target = $region21
    $region20: #{tpu_custom_call.1} parent=1 // pred_region
      _
    $region21: #{tpu_custom_call.1} parent=1 // pred_fallthru
      _
    // Predicated region
    $region22: #{tpu_custom_call.1} parent=1 // pred_check
      _
    $region23: #{tpu_custom_call.1} parent=1 // pred_check_branch
      %27 = sbr.rel (0) target = $region25
    $region24: #{tpu_custom_call.1} parent=1 // pred_region
      _
    $region25: #{tpu_custom_call.1} parent=1 // pred_fallthru
      _
    // Predicated region
    $region26: #{tpu_custom_call.1} parent=1 // pred_check
      _
    $region27: #{tpu_custom_call.1} parent=1 // pred_check_branch
      %29 = sbr.rel (0) target = $region29
    $region28: #{tpu_custom_call.1} parent=1 // pred_region
      _
    $region29: #{tpu_custom_call.1} parent=1 // pred_fallthru
      _
    // Predicated region
    $region30: #{tpu_custom_call.1} parent=1 // pred_check
      _
    $region31: #{tpu_custom_call.1} parent=1 // pred_check_branch
      %31 = sbr.rel (0) target = $region33
    $region32: #{tpu_custom_call.1} parent=1 // pred_region
      _
    $region33: #{tpu_custom_call.1} parent=1 // pred_fallthru
      _
    // Predicated region
    $region34: #{tpu_custom_call.1} parent=1 // pred_check
      _
    $region35: #{tpu_custom_call.1} parent=1 // pred_check_branch
      %33 = sbr.rel (0) target = $region37
    $region36: #{tpu_custom_call.1} parent=1 // pred_region
      _
    $region37: #{tpu_custom_call.1} parent=1 // pred_fallthru
      _
    // Predicated region
    $region38: #{tpu_custom_call.1} parent=1 // pred_check
      _
    $region39: #{tpu_custom_call.1} parent=1 // pred_check_branch
      %35 = sbr.rel (0) target = $region41
    $region40: #{tpu_custom_call.1} parent=1 // pred_region
      _
    $region41: #{tpu_custom_call.1} parent=1 // pred_fallthru
      _
    %v37 = vld [vmem:[%s1] sm:$0xff]
    %v38 = vld [vmem:[%s1 + $0x8] sm:$0xff]
    %s39 = scalar_lea.vmem %s1, 16
    %v40 = vld [vmem:[%s39] sm:$0xff]
    %v41 = vld [vmem:[%s39 + $0x8] sm:$0xff]
    %v44 = vunpack.c.l.b16 %v37
    %v45 = vunpack.c.h.b16 %v37
    %v46 = vunpack.c.l.b16 %v38
    %v47 = vunpack.c.h.b16 %v38
    %v48 = vpack.c.b16 %v44, %v44
    %v49 = vpack.c.b16 %v45, %v45
    %v50 = vpack.c.b16 %v46, %v46
    %v51 = vpack.c.b16 %v47, %v47
    %v54 = vunpack.c.l.b16 %v40
    %v55 = vunpack.c.h.b16 %v40
    %v56 = vunpack.c.l.b16 %v41
    %v57 = vunpack.c.h.b16 %v41
    %v58 = vpack.c.b16 %v54, %v54
    %v59 = vpack.c.b16 %v55, %v55
    %v60 = vpack.c.b16 %v56, %v56
    %v61 = vpack.c.b16 %v57, %v57
    %vm62 = vcmask 1043456
    %v65 = vsel %vm62, %v48, %v58
    %v69 = vsel %vm62, %v49, %v59
    %v73 = vsel %vm62, %v50, %v60
    %v77 = vsel %vm62, %v51, %v61
    %v79 = vld [vmem:[%s2] sm:$0xff]
    %v80 = vld [vmem:[%s2 + $0x8] sm:$0xff]
    %v81 = vld [vmem:[%s2 + $0x10] sm:$0xff]
    %v82 = vld [vmem:[%s2 + $0x18] sm:$0xff]
    %v83 = vld [vmem:[%s2 + $0x20] sm:$0xff]
    %v84 = vld [vmem:[%s2 + $0x28] sm:$0xff]
    %v85 = vld [vmem:[%s2 + $0x30] sm:$0xff]
    %v86 = vld [vmem:[%s2 + $0x38] sm:$0xff]
    %v87 = vld [vmem:[%s2 + $0x40] sm:$0xff]
    %v88 = vld [vmem:[%s2 + $0x48] sm:$0xff]
    %v89 = vld [vmem:[%s2 + $0x50] sm:$0xff]
    %v90 = vld [vmem:[%s2 + $0x58] sm:$0xff]
    %v91 = vld [vmem:[%s2 + $0x60] sm:$0xff]
    %v92 = vld [vmem:[%s2 + $0x68] sm:$0xff]
    %v93 = vld [vmem:[%s2 + $0x70] sm:$0xff]
    %v94 = vld [vmem:[%s2 + $0x78] sm:$0xff]
    %v95 = vld [vmem:[%s2 + $0x80] sm:$0xff]
    %v96 = vld [vmem:[%s2 + $0x88] sm:$0xff]
    %v97 = vld [vmem:[%s2 + $0x90] sm:$0xff]
    %v98 = vld [vmem:[%s2 + $0x98] sm:$0xff]
    %v99 = vld [vmem:[%s2 + $0xa0] sm:$0xff]
    %v100 = vld [vmem:[%s2 + $0xa8] sm:$0xff]
    %v101 = vld [vmem:[%s2 + $0xb0] sm:$0xff]
    %v102 = vld [vmem:[%s2 + $0xb8] sm:$0xff]
    %v103 = vld [vmem:[%s2 + $0xc0] sm:$0xff]
    %v104 = vld [vmem:[%s2 + $0xc8] sm:$0xff]
    %v105 = vld [vmem:[%s2 + $0xd0] sm:$0xff]
    %v106 = vld [vmem:[%s2 + $0xd8] sm:$0xff]
    %v107 = vld [vmem:[%s2 + $0xe0] sm:$0xff]
    %v108 = vld [vmem:[%s2 + $0xe8] sm:$0xff]
    %v109 = vld [vmem:[%s2 + $0xf0] sm:$0xff]
    %v110 = vld [vmem:[%s2 + $0xf8] sm:$0xff]
    %v111 = vld [vmem:[%s2 + $0x100] sm:$0xff]
    %v112 = vld [vmem:[%s2 + $0x108] sm:$0xff]
    %v113 = vld [vmem:[%s2 + $0x110] sm:$0xff]
    %v114 = vld [vmem:[%s2 + $0x118] sm:$0xff]
    %v115 = vld [vmem:[%s2 + $0x120] sm:$0xff]
    %v116 = vld [vmem:[%s2 + $0x128] sm:$0xff]
    %v117 = vld [vmem:[%s2 + $0x130] sm:$0xff]
    %v118 = vld [vmem:[%s2 + $0x138] sm:$0xff]
    %v119 = vld [vmem:[%s2 + $0x140] sm:$0xff]
    %v120 = vld [vmem:[%s2 + $0x148] sm:$0xff]
    %v121 = vld [vmem:[%s2 + $0x150] sm:$0xff]
    %v122 = vld [vmem:[%s2 + $0x158] sm:$0xff]
    %v123 = vld [vmem:[%s2 + $0x160] sm:$0xff]
    %v124 = vld [vmem:[%s2 + $0x168] sm:$0xff]
    %v125 = vld [vmem:[%s2 + $0x170] sm:$0xff]
    %v126 = vld [vmem:[%s2 + $0x178] sm:$0xff]
    %v127 = vld [vmem:[%s2 + $0x180] sm:$0xff]
    %v128 = vld [vmem:[%s2 + $0x188] sm:$0xff]
    %v129 = vld [vmem:[%s2 + $0x190] sm:$0xff]
    %v130 = vld [vmem:[%s2 + $0x198] sm:$0xff]
    %v131 = vld [vmem:[%s2 + $0x1a0] sm:$0xff]
    %v132 = vld [vmem:[%s2 + $0x1a8] sm:$0xff]
    %v133 = vld [vmem:[%s2 + $0x1b0] sm:$0xff]
    %v134 = vld [vmem:[%s2 + $0x1b8] sm:$0xff]
    %v135 = vld [vmem:[%s2 + $0x1c0] sm:$0xff]
    %v136 = vld [vmem:[%s2 + $0x1c8] sm:$0xff]
    %v137 = vld [vmem:[%s2 + $0x1d0] sm:$0xff]
    %v138 = vld [vmem:[%s2 + $0x1d8] sm:$0xff]
    %v139 = vld [vmem:[%s2 + $0x1e0] sm:$0xff]
    %v140 = vld [vmem:[%s2 + $0x1e8] sm:$0xff]
    %v141 = vld [vmem:[%s2 + $0x1f0] sm:$0xff]
    %v142 = vld [vmem:[%s2 + $0x1f8] sm:$0xff]
    %v143 = vld [vmem:[%s3] sm:$0x3]
    %v145 = vlaneseq
    %v146 = vshrl.u32 %v145, 7
    %v147 = vsub.s32 0, %v146
    %v148 = vrot.slane %v143, %v147
    %v149 = vlaneseq
    %v150 = vshrl.u32 %v149, 7
    %v151 = vsub.s32 1, %v150
    %v152 = vrot.slane %v143, %v151
    %v219 = vunpack.c.l.b16 %v79
    %v220 = vunpack.c.h.b16 %v79
    %v221 = vunpack.c.l.b16 %v80
    %v222 = vunpack.c.h.b16 %v80
    %v223 = vunpack.c.l.b16 %v81
    %v224 = vunpack.c.h.b16 %v81
    %v225 = vunpack.c.l.b16 %v82
    %v226 = vunpack.c.h.b16 %v82
    %v227 = vunpack.c.l.b16 %v83
    %v228 = vunpack.c.h.b16 %v83
    %v229 = vunpack.c.l.b16 %v84
    %v230 = vunpack.c.h.b16 %v84
    %v231 = vunpack.c.l.b16 %v85
    %v232 = vunpack.c.h.b16 %v85
    %v233 = vunpack.c.l.b16 %v86
    %v234 = vunpack.c.h.b16 %v86
    %v235 = vunpack.c.l.b16 %v87
    %v236 = vunpack.c.h.b16 %v87
    %v237 = vunpack.c.l.b16 %v88
    %v238 = vunpack.c.h.b16 %v88
    %v239 = vunpack.c.l.b16 %v89
    %v240 = vunpack.c.h.b16 %v89
    %v241 = vunpack.c.l.b16 %v90
    %v242 = vunpack.c.h.b16 %v90
    %v243 = vunpack.c.l.b16 %v91
    %v244 = vunpack.c.h.b16 %v91
    %v245 = vunpack.c.l.b16 %v92
    %v246 = vunpack.c.h.b16 %v92
    %v247 = vunpack.c.l.b16 %v93
    %v248 = vunpack.c.h.b16 %v93
    %v249 = vunpack.c.l.b16 %v94
    %v250 = vunpack.c.h.b16 %v94
    %v251 = vunpack.c.l.b16 %v95
    %v252 = vunpack.c.h.b16 %v95
    %v253 = vunpack.c.l.b16 %v96
    %v254 = vunpack.c.h.b16 %v96
    %v255 = vunpack.c.l.b16 %v97
    %v256 = vunpack.c.h.b16 %v97
    %v257 = vunpack.c.l.b16 %v98
    %v258 = vunpack.c.h.b16 %v98
    %v259 = vunpack.c.l.b16 %v99
    %v260 = vunpack.c.h.b16 %v99
    %v261 = vunpack.c.l.b16 %v100
    %v262 = vunpack.c.h.b16 %v100
    %v263 = vunpack.c.l.b16 %v101
    %v264 = vunpack.c.h.b16 %v101
    %v265 = vunpack.c.l.b16 %v102
    %v266 = vunpack.c.h.b16 %v102
    %v267 = vunpack.c.l.b16 %v103
    %v268 = vunpack.c.h.b16 %v103
    %v269 = vunpack.c.l.b16 %v104
    %v270 = vunpack.c.h.b16 %v104
    %v271 = vunpack.c.l.b16 %v105
    %v272 = vunpack.c.h.b16 %v105
    %v273 = vunpack.c.l.b16 %v106
    %v274 = vunpack.c.h.b16 %v106
    %v275 = vunpack.c.l.b16 %v107
    %v276 = vunpack.c.h.b16 %v107
    %v277 = vunpack.c.l.b16 %v108
    %v278 = vunpack.c.h.b16 %v108
    %v279 = vunpack.c.l.b16 %v109
    %v280 = vunpack.c.h.b16 %v109
    %v281 = vunpack.c.l.b16 %v110
    %v282 = vunpack.c.h.b16 %v110
    %v283 = vunpack.c.l.b16 %v111
    %v284 = vunpack.c.h.b16 %v111
    %v285 = vunpack.c.l.b16 %v112
    %v286 = vunpack.c.h.b16 %v112
    %v287 = vunpack.c.l.b16 %v113
    %v288 = vunpack.c.h.b16 %v113
    %v289 = vunpack.c.l.b16 %v114
    %v290 = vunpack.c.h.b16 %v114
    %v291 = vunpack.c.l.b16 %v115
    %v292 = vunpack.c.h.b16 %v115
    %v293 = vunpack.c.l.b16 %v116
    %v294 = vunpack.c.h.b16 %v116
    %v295 = vunpack.c.l.b16 %v117
    %v296 = vunpack.c.h.b16 %v117
    %v297 = vunpack.c.l.b16 %v118
    %v298 = vunpack.c.h.b16 %v118
    %v299 = vunpack.c.l.b16 %v119
    %v300 = vunpack.c.h.b16 %v119
    %v301 = vunpack.c.l.b16 %v120
    %v302 = vunpack.c.h.b16 %v120
    %v303 = vunpack.c.l.b16 %v121
    %v304 = vunpack.c.h.b16 %v121
    %v305 = vunpack.c.l.b16 %v122
    %v306 = vunpack.c.h.b16 %v122
    %v307 = vunpack.c.l.b16 %v123
    %v308 = vunpack.c.h.b16 %v123
    %v309 = vunpack.c.l.b16 %v124
    %v310 = vunpack.c.h.b16 %v124
    %v311 = vunpack.c.l.b16 %v125
    %v312 = vunpack.c.h.b16 %v125
    %v313 = vunpack.c.l.b16 %v126
    %v314 = vunpack.c.h.b16 %v126
    %v315 = vunpack.c.l.b16 %v127
    %v316 = vunpack.c.h.b16 %v127
    %v317 = vunpack.c.l.b16 %v128
    %v318 = vunpack.c.h.b16 %v128
    %v319 = vunpack.c.l.b16 %v129
    %v320 = vunpack.c.h.b16 %v129
    %v321 = vunpack.c.l.b16 %v130
    %v322 = vunpack.c.h.b16 %v130
    %v323 = vunpack.c.l.b16 %v131
    %v324 = vunpack.c.h.b16 %v131
    %v325 = vunpack.c.l.b16 %v132
    %v326 = vunpack.c.h.b16 %v132
    %v327 = vunpack.c.l.b16 %v133
    %v328 = vunpack.c.h.b16 %v133
    %v329 = vunpack.c.l.b16 %v134
    %v330 = vunpack.c.h.b16 %v134
    %v331 = vunpack.c.l.b16 %v135
    %v332 = vunpack.c.h.b16 %v135
    %v333 = vunpack.c.l.b16 %v136
    %v334 = vunpack.c.h.b16 %v136
    %v335 = vunpack.c.l.b16 %v137
    %v336 = vunpack.c.h.b16 %v137
    %v337 = vunpack.c.l.b16 %v138
    %v338 = vunpack.c.h.b16 %v138
    %v339 = vunpack.c.l.b16 %v139
    %v340 = vunpack.c.h.b16 %v139
    %v341 = vunpack.c.l.b16 %v140
    %v342 = vunpack.c.h.b16 %v140
    %v343 = vunpack.c.l.b16 %v141
    %v344 = vunpack.c.h.b16 %v141
    %v345 = vunpack.c.l.b16 %v142
    %v346 = vunpack.c.h.b16 %v142
    %v347 = vpack.c.b16 %v221, %v219
    %v348 = vpack.c.b16 %v222, %v220
    %v349 = vpack.c.b16 %v225, %v223
    %v350 = vpack.c.b16 %v226, %v224
    %v351 = vpack.c.b16 %v229, %v227
    %v352 = vpack.c.b16 %v230, %v228
    %v353 = vpack.c.b16 %v233, %v231
    %v354 = vpack.c.b16 %v234, %v232
    %v355 = vpack.c.b16 %v237, %v235
    %v356 = vpack.c.b16 %v238, %v236
    %v357 = vpack.c.b16 %v241, %v239
    %v358 = vpack.c.b16 %v242, %v240
    %v359 = vpack.c.b16 %v245, %v243
    %v360 = vpack.c.b16 %v246, %v244
    %v361 = vpack.c.b16 %v249, %v247
    %v362 = vpack.c.b16 %v250, %v248
    %v363 = vpack.c.b16 %v253, %v251
    %v364 = vpack.c.b16 %v254, %v252
    %v365 = vpack.c.b16 %v257, %v255
    %v366 = vpack.c.b16 %v258, %v256
    %v367 = vpack.c.b16 %v261, %v259
    %v368 = vpack.c.b16 %v262, %v260
    %v369 = vpack.c.b16 %v265, %v263
    %v370 = vpack.c.b16 %v266, %v264
    %v371 = vpack.c.b16 %v269, %v267
    %v372 = vpack.c.b16 %v270, %v268
    %v373 = vpack.c.b16 %v273, %v271
    %v374 = vpack.c.b16 %v274, %v272
    %v375 = vpack.c.b16 %v277, %v275
    %v376 = vpack.c.b16 %v278, %v276
    %v377 = vpack.c.b16 %v281, %v279
    %v378 = vpack.c.b16 %v282, %v280
    %v379 = vpack.c.b16 %v285, %v283
    %v380 = vpack.c.b16 %v286, %v284
    %v381 = vpack.c.b16 %v289, %v287
    %v382 = vpack.c.b16 %v290, %v288
    %v383 = vpack.c.b16 %v293, %v291
    %v384 = vpack.c.b16 %v294, %v292
    %v385 = vpack.c.b16 %v297, %v295
    %v386 = vpack.c.b16 %v298, %v296
    %v387 = vpack.c.b16 %v301, %v299
    %v388 = vpack.c.b16 %v302, %v300
    %v389 = vpack.c.b16 %v305, %v303
    %v390 = vpack.c.b16 %v306, %v304
    %v391 = vpack.c.b16 %v309, %v307
    %v392 = vpack.c.b16 %v310, %v308
    %v393 = vpack.c.b16 %v313, %v311
    %v394 = vpack.c.b16 %v314, %v312
    %v395 = vpack.c.b16 %v317, %v315
    %v396 = vpack.c.b16 %v318, %v316
    %v397 = vpack.c.b16 %v321, %v319
    %v398 = vpack.c.b16 %v322, %v320
    %v399 = vpack.c.b16 %v325, %v323
    %v400 = vpack.c.b16 %v326, %v324
    %v401 = vpack.c.b16 %v329, %v327
    %v402 = vpack.c.b16 %v330, %v328
    %v403 = vpack.c.b16 %v333, %v331
    %v404 = vpack.c.b16 %v334, %v332
    %v405 = vpack.c.b16 %v337, %v335
    %v406 = vpack.c.b16 %v338, %v336
    %v407 = vpack.c.b16 %v341, %v339
    %v408 = vpack.c.b16 %v342, %v340
    %v409 = vpack.c.b16 %v345, %v343
    %v410 = vpack.c.b16 %v346, %v344
    %475 = vmatprep.subr.bf16.mxu0 %v348
    %476 = vmatpush1.bf16.msra.mxu0 %v347
    %477 = vmatprep.subr.bf16.mxu0 %v350
    %478 = vmatpush1.bf16.msra.mxu0 %v349
    %479 = vmatprep.subr.bf16.mxu0 %v352
    %480 = vmatpush1.bf16.msra.mxu0 %v351
    %481 = vmatprep.subr.bf16.mxu0 %v354
    %482 = vmatpush1.bf16.msra.mxu0 %v353
    %483 = vmatprep.subr.bf16.mxu0 %v356
    %484 = vmatpush1.bf16.msra.mxu0 %v355
    %485 = vmatprep.subr.bf16.mxu0 %v358
    %486 = vmatpush1.bf16.msra.mxu0 %v357
    %487 = vmatprep.subr.bf16.mxu0 %v360
    %488 = vmatpush1.bf16.msra.mxu0 %v359
    %489 = vmatprep.subr.bf16.mxu0 %v362
    %490 = vmatpush1.bf16.msra.mxu0 %v361
    %491 = vmatprep.subr.bf16.mxu0 %v364
    %492 = vmatpush1.bf16.msra.mxu0 %v363
    %493 = vmatprep.subr.bf16.mxu0 %v366
    %494 = vmatpush1.bf16.msra.mxu0 %v365
    %495 = vmatprep.subr.bf16.mxu0 %v368
    %496 = vmatpush1.bf16.msra.mxu0 %v367
    %497 = vmatprep.subr.bf16.mxu0 %v370
    %498 = vmatpush1.bf16.msra.mxu0 %v369
    %499 = vmatprep.subr.bf16.mxu0 %v372
    %500 = vmatpush1.bf16.msra.mxu0 %v371
    %501 = vmatprep.subr.bf16.mxu0 %v374
    %502 = vmatpush1.bf16.msra.mxu0 %v373
    %503 = vmatprep.subr.bf16.mxu0 %v376
    %504 = vmatpush1.bf16.msra.mxu0 %v375
    %505 = vmatprep.subr.bf16.mxu0 %v378
    %506 = vmatpush1.bf16.msra.mxu0 %v377
    %507 = vmatprep.mubr.bf16.mxu0 %v69
    %508 = vmatmul.mubr.bf16.gmra.mrb[0].mxu0 %v65
    %v509 = vpop.f32.mrb[0].mxu0
    %v510 = vadd.f32 %v148, %v509
    %v511 = vpop.f32.mrb[0].mxu0
    %v512 = vadd.f32 %v152, %v511
    %v513 = vpop.f32.mrb[0].mxu0
    %v514 = vadd.f32 %v148, %v513
    %v515 = vpop.f32.mrb[0].mxu0
    %v516 = vadd.f32 %v152, %v515
    %517 = vdwg.mxu0
    %518 = vmatprep.subr.bf16.mxu0 %v380
    %519 = vmatpush1.bf16.msra.mxu0 %v379
    %520 = vmatprep.subr.bf16.mxu0 %v382
    %521 = vmatpush1.bf16.msra.mxu0 %v381
    %522 = vmatprep.subr.bf16.mxu0 %v384
    %523 = vmatpush1.bf16.msra.mxu0 %v383
    %524 = vmatprep.subr.bf16.mxu0 %v386
    %525 = vmatpush1.bf16.msra.mxu0 %v385
    %526 = vmatprep.subr.bf16.mxu0 %v388
    %527 = vmatpush1.bf16.msra.mxu0 %v387
    %528 = vmatprep.subr.bf16.mxu0 %v390
    %529 = vmatpush1.bf16.msra.mxu0 %v389
    %530 = vmatprep.subr.bf16.mxu0 %v392
    %531 = vmatpush1.bf16.msra.mxu0 %v391
    %532 = vmatprep.subr.bf16.mxu0 %v394
    %533 = vmatpush1.bf16.msra.mxu0 %v393
    %534 = vmatprep.subr.bf16.mxu0 %v396
    %535 = vmatpush1.bf16.msra.mxu0 %v395
    %536 = vmatprep.subr.bf16.mxu0 %v398
    %537 = vmatpush1.bf16.msra.mxu0 %v397
    %538 = vmatprep.subr.bf16.mxu0 %v400
    %539 = vmatpush1.bf16.msra.mxu0 %v399
    %540 = vmatprep.subr.bf16.mxu0 %v402
    %541 = vmatpush1.bf16.msra.mxu0 %v401
    %542 = vmatprep.subr.bf16.mxu0 %v404
    %543 = vmatpush1.bf16.msra.mxu0 %v403
    %544 = vmatprep.subr.bf16.mxu0 %v406
    %545 = vmatpush1.bf16.msra.mxu0 %v405
    %546 = vmatprep.subr.bf16.mxu0 %v408
    %547 = vmatpush1.bf16.msra.mxu0 %v407
    %548 = vmatprep.subr.bf16.mxu0 %v410
    %549 = vmatpush1.bf16.msra.mxu0 %v409
    %550 = vmatprep.mubr.bf16.mxu0 %v77
    %551 = vmatmul.mubr.bf16.gmra.mrb[0].mxu0 %v73
    %v552 = vpop.f32.mrb[0].mxu0
    %v553 = vadd.f32 %v510, %v552
    %v554 = vpop.f32.mrb[0].mxu0
    %v555 = vadd.f32 %v512, %v554
    %v556 = vpop.f32.mrb[0].mxu0
    %v557 = vadd.f32 %v514, %v556
    %v558 = vpop.f32.mrb[0].mxu0
    %v559 = vadd.f32 %v516, %v558
    %560 = vdwg.mxu0
    %v561 = vld [vmem:[%s0] sm:$0xff]
    %v562 = vld [vmem:[%s4] sm:$0xff]
    %v563 = vld [vmem:[%s4 + $0x8] sm:$0xff]
    %v564 = vld [vmem:[%s4 + $0x10] sm:$0xff]
    %v565 = vld [vmem:[%s4 + $0x18] sm:$0xff]
    %v566 = vld [vmem:[%s4 + $0x20] sm:$0xff]
    %v567 = vld [vmem:[%s4 + $0x28] sm:$0xff]
    %v568 = vld [vmem:[%s4 + $0x30] sm:$0xff]
    %v569 = vld [vmem:[%s4 + $0x38] sm:$0xff]
    %v570 = vld [vmem:[%s4 + $0x40] sm:$0xff]
    %v571 = vld [vmem:[%s4 + $0x48] sm:$0xff]
    %v572 = vld [vmem:[%s4 + $0x50] sm:$0xff]
    %v573 = vld [vmem:[%s4 + $0x58] sm:$0xff]
    %v574 = vld [vmem:[%s4 + $0x60] sm:$0xff]
    %v575 = vld [vmem:[%s4 + $0x68] sm:$0xff]
    %v576 = vld [vmem:[%s4 + $0x70] sm:$0xff]
    %v577 = vld [vmem:[%s4 + $0x78] sm:$0xff]
    %v578 = vld [vmem:[%s4 + $0x80] sm:$0xff]
    %v579 = vld [vmem:[%s4 + $0x88] sm:$0xff]
    %v580 = vld [vmem:[%s4 + $0x90] sm:$0xff]
    %v581 = vld [vmem:[%s4 + $0x98] sm:$0xff]
    %v582 = vld [vmem:[%s4 + $0xa0] sm:$0xff]
    %v583 = vld [vmem:[%s4 + $0xa8] sm:$0xff]
    %v584 = vld [vmem:[%s4 + $0xb0] sm:$0xff]
    %v585 = vld [vmem:[%s4 + $0xb8] sm:$0xff]
    %v586 = vld [vmem:[%s5] sm:$0x3]
    %v588 = vlaneseq
    %v589 = vshrl.u32 %v588, 7
    %v590 = vsub.s32 0, %v589
    %v591 = vrot.slane %v586, %v590
    %v592 = vlaneseq
    %v593 = vshrl.u32 %v592, 7
    %v594 = vsub.s32 1, %v593
    %v595 = vrot.slane %v586, %v594
    %v599 = vunpack.c.l.b16 %v561
    %v600 = vunpack.c.h.b16 %v561
    %v601 = vpack.c.b16 %v599, %v599
    %v602 = vpack.c.b16 %v600, %v600
    %v628 = vunpack.c.l.b16 %v562
    %v629 = vunpack.c.h.b16 %v562
    %v630 = vunpack.c.l.b16 %v563
    %v631 = vunpack.c.h.b16 %v563
    %v632 = vunpack.c.l.b16 %v564
    %v633 = vunpack.c.h.b16 %v564
    %v634 = vunpack.c.l.b16 %v565
    %v635 = vunpack.c.h.b16 %v565
    %v636 = vunpack.c.l.b16 %v566
    %v637 = vunpack.c.h.b16 %v566
    %v638 = vunpack.c.l.b16 %v567
    %v639 = vunpack.c.h.b16 %v567
    %v640 = vunpack.c.l.b16 %v568
    %v641 = vunpack.c.h.b16 %v568
    %v642 = vunpack.c.l.b16 %v569
    %v643 = vunpack.c.h.b16 %v569
    %v644 = vunpack.c.l.b16 %v570
    %v645 = vunpack.c.h.b16 %v570
    %v646 = vunpack.c.l.b16 %v571
    %v647 = vunpack.c.h.b16 %v571
    %v648 = vunpack.c.l.b16 %v572
    %v649 = vunpack.c.h.b16 %v572
    %v650 = vunpack.c.l.b16 %v573
    %v651 = vunpack.c.h.b16 %v573
    %v652 = vunpack.c.l.b16 %v574
    %v653 = vunpack.c.h.b16 %v574
    %v654 = vunpack.c.l.b16 %v575
    %v655 = vunpack.c.h.b16 %v575
    %v656 = vunpack.c.l.b16 %v576
    %v657 = vunpack.c.h.b16 %v576
    %v658 = vunpack.c.l.b16 %v577
    %v659 = vunpack.c.h.b16 %v577
    %v660 = vunpack.c.l.b16 %v578
    %v661 = vunpack.c.h.b16 %v578
    %v662 = vunpack.c.l.b16 %v579
    %v663 = vunpack.c.h.b16 %v579
    %v664 = vunpack.c.l.b16 %v580
    %v665 = vunpack.c.h.b16 %v580
    %v666 = vunpack.c.l.b16 %v581
    %v667 = vunpack.c.h.b16 %v581
    %v668 = vunpack.c.l.b16 %v582
    %v669 = vunpack.c.h.b16 %v582
    %v670 = vunpack.c.l.b16 %v583
    %v671 = vunpack.c.h.b16 %v583
    %v672 = vunpack.c.l.b16 %v584
    %v673 = vunpack.c.h.b16 %v584
    %v674 = vunpack.c.l.b16 %v585
    %v675 = vunpack.c.h.b16 %v585
    %v676 = vpack.c.b16 %v630, %v628
    %v677 = vpack.c.b16 %v631, %v629
    %v678 = vpack.c.b16 %v634, %v632
    %v679 = vpack.c.b16 %v635, %v633
    %v680 = vpack.c.b16 %v638, %v636
    %v681 = vpack.c.b16 %v639, %v637
    %v682 = vpack.c.b16 %v642, %v640
    %v683 = vpack.c.b16 %v643, %v641
    %v684 = vpack.c.b16 %v646, %v644
    %v685 = vpack.c.b16 %v647, %v645
    %v686 = vpack.c.b16 %v650, %v648
    %v687 = vpack.c.b16 %v651, %v649
    %v688 = vpack.c.b16 %v654, %v652
    %v689 = vpack.c.b16 %v655, %v653
    %v690 = vpack.c.b16 %v658, %v656
    %v691 = vpack.c.b16 %v659, %v657
    %v692 = vpack.c.b16 %v662, %v660
    %v693 = vpack.c.b16 %v663, %v661
    %v694 = vpack.c.b16 %v666, %v664
    %v695 = vpack.c.b16 %v667, %v665
    %v696 = vpack.c.b16 %v670, %v668
    %v697 = vpack.c.b16 %v671, %v669
    %v698 = vpack.c.b16 %v674, %v672
    %v699 = vpack.c.b16 %v675, %v673
    %vm724 = vcmask 523264
    %v726 = vsel %vm724, %v602, 0
    %728 = vmatprep.subr.bf16.mxu0 %v677
    %729 = vmatpush1.bf16.msra.mxu0 %v676
    %730 = vmatprep.subr.bf16.mxu0 %v679
    %731 = vmatpush1.bf16.msra.mxu0 %v678
    %732 = vmatprep.subr.bf16.mxu0 %v681
    %733 = vmatpush1.bf16.msra.mxu0 %v680
    %734 = vmatprep.subr.bf16.mxu0 %v683
    %735 = vmatpush1.bf16.msra.mxu0 %v682
    %736 = vmatprep.subr.bf16.mxu0 %v685
    %737 = vmatpush1.bf16.msra.mxu0 %v684
    %738 = vmatprep.subr.bf16.mxu0 %v687
    %739 = vmatpush1.bf16.msra.mxu0 %v686
    %740 = vmatprep.subr.bf16.mxu0 %v689
    %741 = vmatpush1.bf16.msra.mxu0 %v688
    %742 = vmatprep.subr.bf16.mxu0 %v691
    %743 = vmatpush1.bf16.msra.mxu0 %v690
    %744 = vmatprep.subr.bf16.mxu0 %v693
    %745 = vmatpush1.bf16.msra.mxu0 %v692
    %746 = vmatprep.subr.bf16.mxu0 %v695
    %747 = vmatpush1.bf16.msra.mxu0 %v694
    %748 = vmatprep.subr.bf16.mxu0 %v697
    %749 = vmatpush1.bf16.msra.mxu0 %v696
    %750 = vmatprep.subr.bf16.mxu0 %v699
    %751 = vmatpush1.bf16.msra.mxu0 %v698
    %752 = vmatprep.subr.bf16.mxu0 0
    %753 = vmatpush1.bf16.msra.mxu0 0
    %754 = vmatprep.subr.bf16.mxu0 0
    %755 = vmatpush1.bf16.msra.mxu0 0
    %756 = vmatprep.subr.bf16.mxu0 0
    %757 = vmatpush1.bf16.msra.mxu0 0
    %758 = vmatprep.subr.bf16.mxu0 0
    %759 = vmatpush1.bf16.msra.mxu0 0
    %760 = vmatprep.mubr.bf16.mxu0 %v726
    %761 = vmatmul.mubr.bf16.gmra.mrb[0].mxu0 %v601
    %v762 = vpop.f32.mrb[0].mxu0
    %v763 = vadd.f32 %v591, %v762
    %v764 = vpop.f32.mrb[0].mxu0
    %v765 = vadd.f32 %v595, %v764
    %v766 = vpop.f32.mrb[0].mxu0
    %v767 = vpop.f32.mrb[0].mxu0
    %768 = vdwg.mxu0
    %v769 = vpack.c.bf16 %v763, %v763
    %v770 = vpack.c.bf16 %v765, %v765
    %v771 = vpack.c.bf16 %v557, %v553
    %v772 = vpack.c.bf16 %v559, %v555
    %v773 = vld [vmem:[%s6] sm:$0xff]
    %v774 = vld [vmem:[%s6 + $0x8] sm:$0xff]
    %v775 = vld [vmem:[%s6 + $0x10] sm:$0xff]
    %v776 = vld [vmem:[%s6 + $0x18] sm:$0xff]
    %v777 = vld [vmem:[%s6 + $0x20] sm:$0xff]
    %v778 = vld [vmem:[%s6 + $0x28] sm:$0xff]
    %v779 = vld [vmem:[%s6 + $0x30] sm:$0xff]
    %v780 = vld [vmem:[%s6 + $0x38] sm:$0xff]
    %v781 = vld [vmem:[%s6 + $0x40] sm:$0xff]
    %v782 = vld [vmem:[%s6 + $0x48] sm:$0xff]
    %v783 = vld [vmem:[%s6 + $0x50] sm:$0xff]
    %v784 = vld [vmem:[%s6 + $0x58] sm:$0xff]
    %v785 = vld [vmem:[%s6 + $0x60] sm:$0xff]
    %v786 = vld [vmem:[%s6 + $0x68] sm:$0xff]
    %v787 = vld [vmem:[%s6 + $0x70] sm:$0xff]
    %v788 = vld [vmem:[%s6 + $0x78] sm:$0xff]
    %v789 = vld [vmem:[%s6 + $0x80] sm:$0xff]
    %v790 = vld [vmem:[%s6 + $0x88] sm:$0xff]
    %v791 = vld [vmem:[%s6 + $0x90] sm:$0xff]
    %v792 = vld [vmem:[%s6 + $0x98] sm:$0xff]
    %v793 = vld [vmem:[%s6 + $0xa0] sm:$0xff]
    %v794 = vld [vmem:[%s6 + $0xa8] sm:$0xff]
    %v795 = vld [vmem:[%s6 + $0xb0] sm:$0xff]
    %v796 = vld [vmem:[%s6 + $0xb8] sm:$0xff]
    %v797 = vld [vmem:[%s6 + $0xc0] sm:$0xff]
    %v798 = vld [vmem:[%s6 + $0xc8] sm:$0xff]
    %v799 = vld [vmem:[%s6 + $0xd0] sm:$0xff]
    %v800 = vld [vmem:[%s6 + $0xd8] sm:$0xff]
    %v801 = vld [vmem:[%s6 + $0xe0] sm:$0xff]
    %v802 = vld [vmem:[%s6 + $0xe8] sm:$0xff]
    %v803 = vld [vmem:[%s6 + $0xf0] sm:$0xff]
    %v804 = vld [vmem:[%s6 + $0xf8] sm:$0xff]
    %v805 = vld [vmem:[%s6 + $0x100] sm:$0xff]
    %v806 = vld [vmem:[%s6 + $0x108] sm:$0xff]
    %v807 = vld [vmem:[%s6 + $0x110] sm:$0xff]
    %v808 = vld [vmem:[%s6 + $0x118] sm:$0xff]
    %v809 = vld [vmem:[%s6 + $0x120] sm:$0xff]
    %v810 = vld [vmem:[%s6 + $0x128] sm:$0xff]
    %v811 = vld [vmem:[%s6 + $0x130] sm:$0xff]
    %v812 = vld [vmem:[%s6 + $0x138] sm:$0xff]
    %v813 = vld [vmem:[%s6 + $0x140] sm:$0xff]
    %v814 = vld [vmem:[%s6 + $0x148] sm:$0xff]
    %v815 = vld [vmem:[%s6 + $0x150] sm:$0xff]
    %v816 = vld [vmem:[%s6 + $0x158] sm:$0xff]
    %v817 = vld [vmem:[%s6 + $0x160] sm:$0xff]
    %v818 = vld [vmem:[%s6 + $0x168] sm:$0xff]
    %v819 = vld [vmem:[%s6 + $0x170] sm:$0xff]
    %v820 = vld [vmem:[%s6 + $0x178] sm:$0xff]
    %v845 = vunpack.c.l.b16 %v797
    %v846 = vunpack.c.h.b16 %v797
    %v847 = vunpack.c.l.b16 %v798
    %v848 = vunpack.c.h.b16 %v798
    %v849 = vunpack.c.l.b16 %v799
    %v850 = vunpack.c.h.b16 %v799
    %v851 = vunpack.c.l.b16 %v800
    %v852 = vunpack.c.h.b16 %v800
    %v853 = vunpack.c.l.b16 %v801
    %v854 = vunpack.c.h.b16 %v801
    %v855 = vunpack.c.l.b16 %v802
    %v856 = vunpack.c.h.b16 %v802
    %v857 = vunpack.c.l.b16 %v803
    %v858 = vunpack.c.h.b16 %v803
    %v859 = vunpack.c.l.b16 %v804
    %v860 = vunpack.c.h.b16 %v804
    %v861 = vunpack.c.l.b16 %v805
    %v862 = vunpack.c.h.b16 %v805
    %v863 = vunpack.c.l.b16 %v806
    %v864 = vunpack.c.h.b16 %v806
    %v865 = vunpack.c.l.b16 %v807
    %v866 = vunpack.c.h.b16 %v807
    %v867 = vunpack.c.l.b16 %v808
    %v868 = vunpack.c.h.b16 %v808
    %v869 = vunpack.c.l.b16 %v809
    %v870 = vunpack.c.h.b16 %v809
    %v871 = vunpack.c.l.b16 %v810
    %v872 = vunpack.c.h.b16 %v810
    %v873 = vunpack.c.l.b16 %v811
    %v874 = vunpack.c.h.b16 %v811
    %v875 = vunpack.c.l.b16 %v812
    %v876 = vunpack.c.h.b16 %v812
    %v877 = vunpack.c.l.b16 %v813
    %v878 = vunpack.c.h.b16 %v813
    %v879 = vunpack.c.l.b16 %v814
    %v880 = vunpack.c.h.b16 %v814
    %v881 = vunpack.c.l.b16 %v815
    %v882 = vunpack.c.h.b16 %v815
    %v883 = vunpack.c.l.b16 %v816
    %v884 = vunpack.c.h.b16 %v816
    %v885 = vunpack.c.l.b16 %v817
    %v886 = vunpack.c.h.b16 %v817
    %v887 = vunpack.c.l.b16 %v818
    %v888 = vunpack.c.h.b16 %v818
    %v889 = vunpack.c.l.b16 %v819
    %v890 = vunpack.c.h.b16 %v819
    %v891 = vunpack.c.l.b16 %v820
    %v892 = vunpack.c.h.b16 %v820
    %v893 = vpack.c.b16 %v847, %v845
    %v894 = vpack.c.b16 %v848, %v846
    %v895 = vpack.c.b16 %v851, %v849
    %v896 = vpack.c.b16 %v852, %v850
    %v897 = vpack.c.b16 %v855, %v853
    %v898 = vpack.c.b16 %v856, %v854
    %v899 = vpack.c.b16 %v859, %v857
    %v900 = vpack.c.b16 %v860, %v858
    %v901 = vpack.c.b16 %v863, %v861
    %v902 = vpack.c.b16 %v864, %v862
    %v903 = vpack.c.b16 %v867, %v865
    %v904 = vpack.c.b16 %v868, %v866
    %v905 = vpack.c.b16 %v871, %v869
    %v906 = vpack.c.b16 %v872, %v870
    %v907 = vpack.c.b16 %v875, %v873
    %v908 = vpack.c.b16 %v876, %v874
    %v909 = vpack.c.b16 %v879, %v877
    %v910 = vpack.c.b16 %v880, %v878
    %v911 = vpack.c.b16 %v883, %v881
    %v912 = vpack.c.b16 %v884, %v882
    %v913 = vpack.c.b16 %v887, %v885
    %v914 = vpack.c.b16 %v888, %v886
    %v915 = vpack.c.b16 %v891, %v889
    %v916 = vpack.c.b16 %v892, %v890
    %v942 = vsel %vm724, %v772, 0
    %944 = vmatprep.subr.bf16.mxu0 %v894
    %945 = vmatpush1.bf16.msra.mxu0 %v893
    %946 = vmatprep.subr.bf16.mxu0 %v896
    %947 = vmatpush1.bf16.msra.mxu0 %v895
    %948 = vmatprep.subr.bf16.mxu0 %v898
    %949 = vmatpush1.bf16.msra.mxu0 %v897
    %950 = vmatprep.subr.bf16.mxu0 %v900
    %951 = vmatpush1.bf16.msra.mxu0 %v899
    %952 = vmatprep.subr.bf16.mxu0 %v902
    %953 = vmatpush1.bf16.msra.mxu0 %v901
    %954 = vmatprep.subr.bf16.mxu0 %v904
    %955 = vmatpush1.bf16.msra.mxu0 %v903
    %956 = vmatprep.subr.bf16.mxu0 %v906
    %957 = vmatpush1.bf16.msra.mxu0 %v905
    %958 = vmatprep.subr.bf16.mxu0 %v908
    %959 = vmatpush1.bf16.msra.mxu0 %v907
    %960 = vmatprep.subr.bf16.mxu0 %v910
    %961 = vmatpush1.bf16.msra.mxu0 %v909
    %962 = vmatprep.subr.bf16.mxu0 %v912
    %963 = vmatpush1.bf16.msra.mxu0 %v911
    %964 = vmatprep.subr.bf16.mxu0 %v914
    %965 = vmatpush1.bf16.msra.mxu0 %v913
    %966 = vmatprep.subr.bf16.mxu0 %v916
    %967 = vmatpush1.bf16.msra.mxu0 %v915
    %968 = vmatprep.subr.bf16.mxu0 0
    %969 = vmatpush1.bf16.msra.mxu0 0
    %970 = vmatprep.subr.bf16.mxu0 0
    %971 = vmatpush1.bf16.msra.mxu0 0
    %972 = vmatprep.subr.bf16.mxu0 0
    %973 = vmatpush1.bf16.msra.mxu0 0
    %974 = vmatprep.subr.bf16.mxu0 0
    %975 = vmatpush1.bf16.msra.mxu0 0
    %976 = vmatprep.mubr.bf16.mxu0 %v942
    %977 = vmatmul.mubr.bf16.gmra.mrb[0].mxu0 %v771
    %v978 = vpop.f32.mrb[0].mxu0
    %v979 = vadd.f32 0.0, %v978
    %v980 = vpop.f32.mrb[0].mxu0
    %v981 = vadd.f32 0.0, %v980
    %v982 = vpop.f32.mrb[0].mxu0
    %v983 = vpop.f32.mrb[0].mxu0
    %984 = vdwg.mxu0
    %v1009 = vunpack.c.l.b16 %v773
    %v1010 = vunpack.c.h.b16 %v773
    %v1011 = vunpack.c.l.b16 %v774
    %v1012 = vunpack.c.h.b16 %v774
    %v1013 = vunpack.c.l.b16 %v775
    %v1014 = vunpack.c.h.b16 %v775
    %v1015 = vunpack.c.l.b16 %v776
    %v1016 = vunpack.c.h.b16 %v776
    %v1017 = vunpack.c.l.b16 %v777
    %v1018 = vunpack.c.h.b16 %v777
    %v1019 = vunpack.c.l.b16 %v778
    %v1020 = vunpack.c.h.b16 %v778
    %v1021 = vunpack.c.l.b16 %v779
    %v1022 = vunpack.c.h.b16 %v779
    %v1023 = vunpack.c.l.b16 %v780
    %v1024 = vunpack.c.h.b16 %v780
    %v1025 = vunpack.c.l.b16 %v781
    %v1026 = vunpack.c.h.b16 %v781
    %v1027 = vunpack.c.l.b16 %v782
    %v1028 = vunpack.c.h.b16 %v782
    %v1029 = vunpack.c.l.b16 %v783
    %v1030 = vunpack.c.h.b16 %v783
    %v1031 = vunpack.c.l.b16 %v784
    %v1032 = vunpack.c.h.b16 %v784
    %v1033 = vunpack.c.l.b16 %v785
    %v1034 = vunpack.c.h.b16 %v785
    %v1035 = vunpack.c.l.b16 %v786
    %v1036 = vunpack.c.h.b16 %v786
    %v1037 = vunpack.c.l.b16 %v787
    %v1038 = vunpack.c.h.b16 %v787
    %v1039 = vunpack.c.l.b16 %v788
    %v1040 = vunpack.c.h.b16 %v788
    %v1041 = vunpack.c.l.b16 %v789
    %v1042 = vunpack.c.h.b16 %v789
    %v1043 = vunpack.c.l.b16 %v790
    %v1044 = vunpack.c.h.b16 %v790
    %v1045 = vunpack.c.l.b16 %v791
    %v1046 = vunpack.c.h.b16 %v791
    %v1047 = vunpack.c.l.b16 %v792
    %v1048 = vunpack.c.h.b16 %v792
    %v1049 = vunpack.c.l.b16 %v793
    %v1050 = vunpack.c.h.b16 %v793
    %v1051 = vunpack.c.l.b16 %v794
    %v1052 = vunpack.c.h.b16 %v794
    %v1053 = vunpack.c.l.b16 %v795
    %v1054 = vunpack.c.h.b16 %v795
    %v1055 = vunpack.c.l.b16 %v796
    %v1056 = vunpack.c.h.b16 %v796
    %v1057 = vpack.c.b16 %v1011, %v1009
    %v1058 = vpack.c.b16 %v1012, %v1010
    %v1059 = vpack.c.b16 %v1015, %v1013
    %v1060 = vpack.c.b16 %v1016, %v1014
    %v1061 = vpack.c.b16 %v1019, %v1017
    %v1062 = vpack.c.b16 %v1020, %v1018
    %v1063 = vpack.c.b16 %v1023, %v1021
    %v1064 = vpack.c.b16 %v1024, %v1022
    %v1065 = vpack.c.b16 %v1027, %v1025
    %v1066 = vpack.c.b16 %v1028, %v1026
    %v1067 = vpack.c.b16 %v1031, %v1029
    %v1068 = vpack.c.b16 %v1032, %v1030
    %v1069 = vpack.c.b16 %v1035, %v1033
    %v1070 = vpack.c.b16 %v1036, %v1034
    %v1071 = vpack.c.b16 %v1039, %v1037
    %v1072 = vpack.c.b16 %v1040, %v1038
    %v1073 = vpack.c.b16 %v1043, %v1041
    %v1074 = vpack.c.b16 %v1044, %v1042
    %v1075 = vpack.c.b16 %v1047, %v1045
    %v1076 = vpack.c.b16 %v1048, %v1046
    %v1077 = vpack.c.b16 %v1051, %v1049
    %v1078 = vpack.c.b16 %v1052, %v1050
    %v1079 = vpack.c.b16 %v1055, %v1053
    %v1080 = vpack.c.b16 %v1056, %v1054
    %v1106 = vsel %vm724, %v770, 0
    %1108 = vmatprep.subr.bf16.mxu0 %v1058
    %1109 = vmatpush1.bf16.msra.mxu0 %v1057
    %1110 = vmatprep.subr.bf16.mxu0 %v1060
    %1111 = vmatpush1.bf16.msra.mxu0 %v1059
    %1112 = vmatprep.subr.bf16.mxu0 %v1062
    %1113 = vmatpush1.bf16.msra.mxu0 %v1061
    %1114 = vmatprep.subr.bf16.mxu0 %v1064
    %1115 = vmatpush1.bf16.msra.mxu0 %v1063
    %1116 = vmatprep.subr.bf16.mxu0 %v1066
    %1117 = vmatpush1.bf16.msra.mxu0 %v1065
    %1118 = vmatprep.subr.bf16.mxu0 %v1068
    %1119 = vmatpush1.bf16.msra.mxu0 %v1067
    %1120 = vmatprep.subr.bf16.mxu0 %v1070
    %1121 = vmatpush1.bf16.msra.mxu0 %v1069
    %1122 = vmatprep.subr.bf16.mxu0 %v1072
    %1123 = vmatpush1.bf16.msra.mxu0 %v1071
    %1124 = vmatprep.subr.bf16.mxu0 %v1074
    %1125 = vmatpush1.bf16.msra.mxu0 %v1073
    %1126 = vmatprep.subr.bf16.mxu0 %v1076
    %1127 = vmatpush1.bf16.msra.mxu0 %v1075
    %1128 = vmatprep.subr.bf16.mxu0 %v1078
    %1129 = vmatpush1.bf16.msra.mxu0 %v1077
    %1130 = vmatprep.subr.bf16.mxu0 %v1080
    %1131 = vmatpush1.bf16.msra.mxu0 %v1079
    %1132 = vmatprep.subr.bf16.mxu0 0
    %1133 = vmatpush1.bf16.msra.mxu0 0
    %1134 = vmatprep.subr.bf16.mxu0 0
    %1135 = vmatpush1.bf16.msra.mxu0 0
    %1136 = vmatprep.subr.bf16.mxu0 0
    %1137 = vmatpush1.bf16.msra.mxu0 0
    %1138 = vmatprep.subr.bf16.mxu0 0
    %1139 = vmatpush1.bf16.msra.mxu0 0
    %1140 = vmatprep.mubr.bf16.mxu0 %v1106
    %1141 = vmatmul.mubr.bf16.gmra.mrb[0].mxu0 %v769
    %v1142 = vpop.f32.mrb[0].mxu0
    %v1143 = vadd.f32 %v979, %v1142
    %v1144 = vpop.f32.mrb[0].mxu0
    %v1145 = vadd.f32 %v981, %v1144
    %v1146 = vpop.f32.mrb[0].mxu0
    %v1147 = vpop.f32.mrb[0].mxu0
    %1148 = vdwg.mxu0
    %v1149 = vld [vmem:[%s6 + $0x180] sm:$0xff]
    %v1150 = vld [vmem:[%s6 + $0x188] sm:$0xff]
    %v1151 = vld [vmem:[%s6 + $0x190] sm:$0xff]
    %v1152 = vld [vmem:[%s6 + $0x198] sm:$0xff]
    %v1153 = vld [vmem:[%s6 + $0x1a0] sm:$0xff]
    %v1154 = vld [vmem:[%s6 + $0x1a8] sm:$0xff]
    %v1155 = vld [vmem:[%s6 + $0x1b0] sm:$0xff]
    %v1156 = vld [vmem:[%s6 + $0x1b8] sm:$0xff]
    %v1157 = vld [vmem:[%s6 + $0x1c0] sm:$0xff]
    %v1158 = vld [vmem:[%s6 + $0x1c8] sm:$0xff]
    %v1159 = vld [vmem:[%s6 + $0x1d0] sm:$0xff]
    %v1160 = vld [vmem:[%s6 + $0x1d8] sm:$0xff]
    %v1161 = vld [vmem:[%s6 + $0x1e0] sm:$0xff]
    %v1162 = vld [vmem:[%s6 + $0x1e8] sm:$0xff]
    %v1163 = vld [vmem:[%s6 + $0x1f0] sm:$0xff]
    %v1164 = vld [vmem:[%s6 + $0x1f8] sm:$0xff]
    %v1165 = vld [vmem:[%s6 + $0x200] sm:$0xff]
    %v1166 = vld [vmem:[%s6 + $0x208] sm:$0xff]
    %v1167 = vld [vmem:[%s6 + $0x210] sm:$0xff]
    %v1168 = vld [vmem:[%s6 + $0x218] sm:$0xff]
    %v1169 = vld [vmem:[%s6 + $0x220] sm:$0xff]
    %v1170 = vld [vmem:[%s6 + $0x228] sm:$0xff]
    %v1171 = vld [vmem:[%s6 + $0x230] sm:$0xff]
    %v1172 = vld [vmem:[%s6 + $0x238] sm:$0xff]
    %v1175 = vrot.slane %v771, 4
    %v1176 = vrot.slane %v772, 4
    %v1202 = vunpack.c.l.b16 %v1149
    %v1203 = vunpack.c.h.b16 %v1149
    %v1204 = vunpack.c.l.b16 %v1150
    %v1205 = vunpack.c.h.b16 %v1150
    %v1206 = vunpack.c.l.b16 %v1151
    %v1207 = vunpack.c.h.b16 %v1151
    %v1208 = vunpack.c.l.b16 %v1152
    %v1209 = vunpack.c.h.b16 %v1152
    %v1210 = vunpack.c.l.b16 %v1153
    %v1211 = vunpack.c.h.b16 %v1153
    %v1212 = vunpack.c.l.b16 %v1154
    %v1213 = vunpack.c.h.b16 %v1154
    %v1214 = vunpack.c.l.b16 %v1155
    %v1215 = vunpack.c.h.b16 %v1155
    %v1216 = vunpack.c.l.b16 %v1156
    %v1217 = vunpack.c.h.b16 %v1156
    %v1218 = vunpack.c.l.b16 %v1157
    %v1219 = vunpack.c.h.b16 %v1157
    %v1220 = vunpack.c.l.b16 %v1158
    %v1221 = vunpack.c.h.b16 %v1158
    %v1222 = vunpack.c.l.b16 %v1159
    %v1223 = vunpack.c.h.b16 %v1159
    %v1224 = vunpack.c.l.b16 %v1160
    %v1225 = vunpack.c.h.b16 %v1160
    %v1226 = vunpack.c.l.b16 %v1161
    %v1227 = vunpack.c.h.b16 %v1161
    %v1228 = vunpack.c.l.b16 %v1162
    %v1229 = vunpack.c.h.b16 %v1162
    %v1230 = vunpack.c.l.b16 %v1163
    %v1231 = vunpack.c.h.b16 %v1163
    %v1232 = vunpack.c.l.b16 %v1164
    %v1233 = vunpack.c.h.b16 %v1164
    %v1234 = vunpack.c.l.b16 %v1165
    %v1235 = vunpack.c.h.b16 %v1165
    %v1236 = vunpack.c.l.b16 %v1166
    %v1237 = vunpack.c.h.b16 %v1166
    %v1238 = vunpack.c.l.b16 %v1167
    %v1239 = vunpack.c.h.b16 %v1167
    %v1240 = vunpack.c.l.b16 %v1168
    %v1241 = vunpack.c.h.b16 %v1168
    %v1242 = vunpack.c.l.b16 %v1169
    %v1243 = vunpack.c.h.b16 %v1169
    %v1244 = vunpack.c.l.b16 %v1170
    %v1245 = vunpack.c.h.b16 %v1170
    %v1246 = vunpack.c.l.b16 %v1171
    %v1247 = vunpack.c.h.b16 %v1171
    %v1248 = vunpack.c.l.b16 %v1172
    %v1249 = vunpack.c.h.b16 %v1172
    %v1250 = vpack.c.b16 %v1204, %v1202
    %v1251 = vpack.c.b16 %v1205, %v1203
    %v1252 = vpack.c.b16 %v1208, %v1206
    %v1253 = vpack.c.b16 %v1209, %v1207
    %v1254 = vpack.c.b16 %v1212, %v1210
    %v1255 = vpack.c.b16 %v1213, %v1211
    %v1256 = vpack.c.b16 %v1216, %v1214
    %v1257 = vpack.c.b16 %v1217, %v1215
    %v1258 = vpack.c.b16 %v1220, %v1218
    %v1259 = vpack.c.b16 %v1221, %v1219
    %v1260 = vpack.c.b16 %v1224, %v1222
    %v1261 = vpack.c.b16 %v1225, %v1223
    %v1262 = vpack.c.b16 %v1228, %v1226
    %v1263 = vpack.c.b16 %v1229, %v1227
    %v1264 = vpack.c.b16 %v1232, %v1230
    %v1265 = vpack.c.b16 %v1233, %v1231
    %v1266 = vpack.c.b16 %v1236, %v1234
    %v1267 = vpack.c.b16 %v1237, %v1235
    %v1268 = vpack.c.b16 %v1240, %v1238
    %v1269 = vpack.c.b16 %v1241, %v1239
    %v1270 = vpack.c.b16 %v1244, %v1242
    %v1271 = vpack.c.b16 %v1245, %v1243
    %v1272 = vpack.c.b16 %v1248, %v1246
    %v1273 = vpack.c.b16 %v1249, %v1247
    %v1299 = vsel %vm724, %v1176, 0
    %1301 = vmatprep.subr.bf16.mxu0 %v1251
    %1302 = vmatpush1.bf16.msra.mxu0 %v1250
    %1303 = vmatprep.subr.bf16.mxu0 %v1253
    %1304 = vmatpush1.bf16.msra.mxu0 %v1252
    %1305 = vmatprep.subr.bf16.mxu0 %v1255
    %1306 = vmatpush1.bf16.msra.mxu0 %v1254
    %1307 = vmatprep.subr.bf16.mxu0 %v1257
    %1308 = vmatpush1.bf16.msra.mxu0 %v1256
    %1309 = vmatprep.subr.bf16.mxu0 %v1259
    %1310 = vmatpush1.bf16.msra.mxu0 %v1258
    %1311 = vmatprep.subr.bf16.mxu0 %v1261
    %1312 = vmatpush1.bf16.msra.mxu0 %v1260
    %1313 = vmatprep.subr.bf16.mxu0 %v1263
    %1314 = vmatpush1.bf16.msra.mxu0 %v1262
    %1315 = vmatprep.subr.bf16.mxu0 %v1265
    %1316 = vmatpush1.bf16.msra.mxu0 %v1264
    %1317 = vmatprep.subr.bf16.mxu0 %v1267
    %1318 = vmatpush1.bf16.msra.mxu0 %v1266
    %1319 = vmatprep.subr.bf16.mxu0 %v1269
    %1320 = vmatpush1.bf16.msra.mxu0 %v1268
    %1321 = vmatprep.subr.bf16.mxu0 %v1271
    %1322 = vmatpush1.bf16.msra.mxu0 %v1270
    %1323 = vmatprep.subr.bf16.mxu0 %v1273
    %1324 = vmatpush1.bf16.msra.mxu0 %v1272
    %1325 = vmatprep.subr.bf16.mxu0 0
    %1326 = vmatpush1.bf16.msra.mxu0 0
    %1327 = vmatprep.subr.bf16.mxu0 0
    %1328 = vmatpush1.bf16.msra.mxu0 0
    %1329 = vmatprep.subr.bf16.mxu0 0
    %1330 = vmatpush1.bf16.msra.mxu0 0
    %1331 = vmatprep.subr.bf16.mxu0 0
    %1332 = vmatpush1.bf16.msra.mxu0 0
    %1333 = vmatprep.mubr.bf16.mxu0 %v1299
    %1334 = vmatmul.mubr.bf16.gmra.mrb[0].mxu0 %v1175
    %v1335 = vpop.f32.mrb[0].mxu0
    %v1336 = vadd.f32 0.0, %v1335
    %v1337 = vpop.f32.mrb[0].mxu0
    %v1338 = vadd.f32 0.0, %v1337
    %v1339 = vpop.f32.mrb[0].mxu0
    %v1340 = vpop.f32.mrb[0].mxu0
    %1341 = vdwg.mxu0
    %v1342 = vadd.f32 %v1143, %v1336
    %v1343 = vadd.f32 %v1145, %v1338
    %v1344 = vld [vmem:[%s7] sm:$0x3]
    %v1346 = vlaneseq
    %v1347 = vshrl.u32 %v1346, 7
    %v1348 = vsub.s32 0, %v1347
    %v1349 = vrot.slane %v1344, %v1348
    %v1350 = vlaneseq
    %v1351 = vshrl.u32 %v1350, 7
    %v1352 = vsub.s32 1, %v1351
    %v1353 = vrot.slane %v1344, %v1352
    %v1356 = vadd.f32 %v1342, %v1349
    %v1357 = vadd.f32 %v1343, %v1353
    %v1358 = vmax.f32 %v1356, 0.0
    %v1359 = vmax.f32 %v1357, 0.0
    %v1360 = vpack.c.bf16 %v1358, %v1358
    %v1361 = vpack.c.bf16 %v1359, %v1359
    %v1362 = vld [vmem:[%s8] sm:$0xf]
    %v1363 = vld [vmem:[%s8 + $0x4] sm:$0xf]
    %v1364 = vld [vmem:[%s8 + $0x8] sm:$0xf]
    %v1365 = vld [vmem:[%s8 + $0xc] sm:$0xf]
    %v1366 = vld [vmem:[%s8 + $0x10] sm:$0xf]
    %v1367 = vld [vmem:[%s8 + $0x14] sm:$0xf]
    %v1368 = vld [vmem:[%s8 + $0x18] sm:$0xf]
    %v1369 = vld [vmem:[%s8 + $0x1c] sm:$0xf]
    %v1370 = vld [vmem:[%s8 + $0x20] sm:$0xf]
    %v1371 = vld [vmem:[%s8 + $0x24] sm:$0xf]
    %v1372 = vld [vmem:[%s8 + $0x28] sm:$0xf]
    %v1373 = vld [vmem:[%s8 + $0x2c] sm:$0xf]
    %v1374 = vld [vmem:[%s8 + $0x30] sm:$0xf]
    %v1375 = vld [vmem:[%s8 + $0x34] sm:$0xf]
    %v1376 = vld [vmem:[%s8 + $0x38] sm:$0xf]
    %v1377 = vld [vmem:[%s8 + $0x3c] sm:$0xf]
    %v1378 = vld [vmem:[%s8 + $0x40] sm:$0xf]
    %v1379 = vld [vmem:[%s8 + $0x44] sm:$0xf]
    %v1380 = vld [vmem:[%s8 + $0x48] sm:$0xf]
    %v1381 = vld [vmem:[%s8 + $0x4c] sm:$0xf]
    %v1382 = vld [vmem:[%s8 + $0x50] sm:$0xf]
    %v1383 = vld [vmem:[%s8 + $0x54] sm:$0xf]
    %v1384 = vld [vmem:[%s8 + $0x58] sm:$0xf]
    %v1385 = vld [vmem:[%s8 + $0x5c] sm:$0xf]
    %v1386 = vld [vmem:[%s9] sm:$0x1]
    %v1388 = vlaneseq
    %v1389 = vshrl.u32 %v1388, 7
    %v1390 = vsub.s32 0, %v1389
    %v1391 = vrot.slane %v1386, %v1390
    %v1417 = vunpack.c.l.b16 %v1362
    %v1418 = vunpack.c.l.b16 %v1363
    %v1419 = vunpack.c.l.b16 %v1364
    %v1420 = vunpack.c.l.b16 %v1365
    %v1421 = vunpack.c.l.b16 %v1366
    %v1422 = vunpack.c.l.b16 %v1367
    %v1423 = vunpack.c.l.b16 %v1368
    %v1424 = vunpack.c.l.b16 %v1369
    %v1425 = vunpack.c.l.b16 %v1370
    %v1426 = vunpack.c.l.b16 %v1371
    %v1427 = vunpack.c.l.b16 %v1372
    %v1428 = vunpack.c.l.b16 %v1373
    %v1429 = vunpack.c.l.b16 %v1374
    %v1430 = vunpack.c.l.b16 %v1375
    %v1431 = vunpack.c.l.b16 %v1376
    %v1432 = vunpack.c.l.b16 %v1377
    %v1433 = vunpack.c.l.b16 %v1378
    %v1434 = vunpack.c.l.b16 %v1379
    %v1435 = vunpack.c.l.b16 %v1380
    %v1436 = vunpack.c.l.b16 %v1381
    %v1437 = vunpack.c.l.b16 %v1382
    %v1438 = vunpack.c.l.b16 %v1383
    %v1439 = vunpack.c.l.b16 %v1384
    %v1440 = vunpack.c.l.b16 %v1385
    %v1441 = vpack.c.b16 %v1418, %v1417
    %v1442 = vpack.c.b16 %v1420, %v1419
    %v1443 = vpack.c.b16 %v1422, %v1421
    %v1444 = vpack.c.b16 %v1424, %v1423
    %v1445 = vpack.c.b16 %v1426, %v1425
    %v1446 = vpack.c.b16 %v1428, %v1427
    %v1447 = vpack.c.b16 %v1430, %v1429
    %v1448 = vpack.c.b16 %v1432, %v1431
    %v1449 = vpack.c.b16 %v1434, %v1433
    %v1450 = vpack.c.b16 %v1436, %v1435
    %v1451 = vpack.c.b16 %v1438, %v1437
    %v1452 = vpack.c.b16 %v1440, %v1439
    %v1466 = vsel %vm724, %v1361, 0
    %1468 = vmatprep.subr.bf16.mxu0 0
    %1469 = vmatpush1.bf16.msra.mxu0 %v1441
    %1470 = vmatprep.subr.bf16.mxu0 0
    %1471 = vmatpush1.bf16.msra.mxu0 %v1442
    %1472 = vmatprep.subr.bf16.mxu0 0
    %1473 = vmatpush1.bf16.msra.mxu0 %v1443
    %1474 = vmatprep.subr.bf16.mxu0 0
    %1475 = vmatpush1.bf16.msra.mxu0 %v1444
    %1476 = vmatprep.subr.bf16.mxu0 0
    %1477 = vmatpush1.bf16.msra.mxu0 %v1445
    %1478 = vmatprep.subr.bf16.mxu0 0
    %1479 = vmatpush1.bf16.msra.mxu0 %v1446
    %1480 = vmatprep.subr.bf16.mxu0 0
    %1481 = vmatpush1.bf16.msra.mxu0 %v1447
    %1482 = vmatprep.subr.bf16.mxu0 0
    %1483 = vmatpush1.bf16.msra.mxu0 %v1448
    %1484 = vmatprep.subr.bf16.mxu0 0
    %1485 = vmatpush1.bf16.msra.mxu0 %v1449
    %1486 = vmatprep.subr.bf16.mxu0 0
    %1487 = vmatpush1.bf16.msra.mxu0 %v1450
    %1488 = vmatprep.subr.bf16.mxu0 0
    %1489 = vmatpush1.bf16.msra.mxu0 %v1451
    %1490 = vmatprep.subr.bf16.mxu0 0
    %1491 = vmatpush1.bf16.msra.mxu0 %v1452
    %1492 = vmatprep.subr.bf16.mxu0 0
    %1493 = vmatpush1.bf16.msra.mxu0 0
    %1494 = vmatprep.subr.bf16.mxu0 0
    %1495 = vmatpush1.bf16.msra.mxu0 0
    %1496 = vmatprep.subr.bf16.mxu0 0
    %1497 = vmatpush1.bf16.msra.mxu0 0
    %1498 = vmatprep.subr.bf16.mxu0 0
    %1499 = vmatpush1.bf16.msra.mxu0 0
    %1500 = vmatprep.mubr.bf16.mxu0 %v1466
    %1501 = vmatmul.mubr.bf16.gmra.mrb[0].mxu0 %v1360
    %v1502 = vpop.f32.mrb[0].mxu0
    %v1503 = vadd.f32 %v1391, %v1502
    %v1504 = vpop.f32.mrb[0].mxu0
    %v1505 = vpop.f32.mrb[0].mxu0
    %v1506 = vpop.f32.mrb[0].mxu0
    %1507 = vdwg.mxu0
    %1508 = vst [vmem:[#allocation2] sm:$0xff] %v1503
    // Predicated region
    $region42: #{tpu_custom_call.1} parent=1 // pred_check
      _
    $region43: #{tpu_custom_call.1} parent=1 // pred_check_branch
      %1510 = sbr.rel (0) target = $region45
    $region44: #{tpu_custom_call.1} parent=1 // pred_region
      %s1512 = ssub.s32 128, 128
      %1513 = vsyncadd [#allocation3], %s1512
      %s1515 = sshll.u32 [#allocation2], 4
      %s1516 = int_to_ptr.vmem [resolvable:$true] %s1515
      %1518 = dma.vmem_to_hbm [thread:$0]  %s1516, 128, %s10, [#allocation3]
    $region45: #{tpu_custom_call.1} parent=1 // pred_fallthru
      _
    // Predicated region
    $region46: #{tpu_custom_call.1} parent=1 // pred_check
      _
    $region47: #{tpu_custom_call.1} parent=1 // pred_check_branch
      %1520 = sbr.rel (0) target = $region49
    $region48: #{tpu_custom_call.1} parent=1 // pred_region
      %1521 = dma.done [#allocation3], 128
    $region49: #{tpu_custom_call.1} parent=1 // pred_fallthru
      _
    %1522 = vsyncpa [#allocation3], 1

</llo_original>
